<compile_context>
chip_gen: v7x
topology: tpu7x:2x2x1
jax: 0.10.0
libtpu: 0.0.40
codegen_flags: <defaults>
</compile_context>

<pallas_src>
import functools

import jax
import jax.numpy as jnp
from jax.experimental import pallas as pl
from jax.experimental.pallas import tpu as pltpu

_LANE = 128
_SUBLANE = 8
_VMEM_BUDGET = 48 << 20          # leave headroom under v7x's 64 MiB per-TC VMEM


def _silu(x):
    return x * jax.nn.sigmoid(x)


def _round_up(v, m):
    return ((v + m - 1) // m) * m


def _pad2(a, rows, cols):
    # Python-level no-op when already aligned (avoids per-call HBM passes).
    if a.shape == (rows, cols):
        return a
    return jnp.pad(a, ((0, rows - a.shape[0]), (0, cols - a.shape[1])))


# ---------------------------------------------------------------------------
# Kernel
# ---------------------------------------------------------------------------
def _crm_kernel(x_ref, cond_ref,
                wc1_ref, bc1_ref,        # cond Linear 1 (bf16 W, f32 b)
                wc2_ref, bc2_ref,        # fused adaLN projection [L, 3*n_p]
                wm1_ref, bm1_ref,        # mlp Linear 1
                wm2_ref, bm2_ref,        # mlp Linear 2 (1/num_blocks folded in)
                o_ref, *, noise_dim, n_pad):
    f32 = jnp.float32
    bf16 = jnp.bfloat16

    # --- F.layer_norm(x, [noise_dim]) : no affine, eps=1e-5, biased variance ----
    x = x_ref[...].astype(f32)                      # (tb, n_pad); padded lanes are 0
    inv_n = 1.0 / noise_dim
    mean = jnp.sum(x, axis=-1, keepdims=True) * inv_n
    centered = x - mean
    if noise_dim != n_pad:
        # cheap (1, n_pad) lane mask, broadcast by jnp.where
        lane = jax.lax.broadcasted_iota(jnp.int32, (1, n_pad), 1)
        centered = jnp.where(lane < noise_dim, centered, 0.0)
    var = jnp.sum(centered * centered, axis=-1, keepdims=True) * inv_n
    x_norm = centered * jax.lax.rsqrt(var + 1e-5)   # zero in padded lanes

    # --- conditioning_layer: Linear -> SiLU -> fused Linear (scale1|shift|scale2) ---
    cond = cond_ref[...].astype(bf16)
    h = jnp.dot(cond, wc1_ref[...], preferred_element_type=f32) + bc1_ref[...]
    h = _silu(h)
    sss = jnp.dot(h.astype(bf16), wc2_ref[...], preferred_element_type=f32) + bc2_ref[...]
    scale1 = sss[:, :n_pad]                          # lane-aligned slices (free)
    shift = sss[:, n_pad:2 * n_pad]
    scale2 = sss[:, 2 * n_pad:]

    # --- self.mlp(scale1 * x_norm + shift) * scale2  (1/num_blocks pre-folded) ---
    y = scale1 * x_norm + shift                      # f32 modulation; padded lanes 0
    h2 = _silu(jnp.dot(y.astype(bf16), wm1_ref[...], preferred_element_type=f32)
               + bm1_ref[...])
    out = jnp.dot(h2.astype(bf16), wm2_ref[...], preferred_element_type=f32) + bm2_ref[...]

    # residual re-loaded here (keeps no (tb, n_pad) f32 live across the matmuls)
    o_ref[...] = (out * scale2 + x_ref[...].astype(f32)).astype(o_ref.dtype)


# ---------------------------------------------------------------------------
# One-time parameter preparation (hoisted out of the per-call forward path)
# ---------------------------------------------------------------------------
def prepare_params(params, num_blocks, noise_dim, cond_dim, latent_dim,
                   matmul_dtype=jnp.bfloat16):
    (wc1, bc1, wc2, bc2, wm1, bm1, wm2, bm2) = params
    n_p = _round_up(noise_dim, _LANE)
    c_p = _round_up(cond_dim, _LANE)
    l_p = _round_up(latent_dim, _LANE)

    # Fold 1/num_blocks into the last linear of self.mlp.
    inv_nb = jnp.float32(1.0 / num_blocks)
    wm2 = wm2 * inv_nb
    bm2 = bm2 * inv_nb

    # Split the adaLN projection, pad each chunk to n_p lanes, re-fuse into one matmul.
    n = noise_dim
    w_s1, w_sh, w_s2 = wc2[:, :n], wc2[:, n:2 * n], wc2[:, 2 * n:]
    b_s1, b_sh, b_s2 = bc2[:, :n], bc2[:, n:2 * n], bc2[:, 2 * n:]
    wc2f = jnp.concatenate([_pad2(w_s1, latent_dim, n_p),
                            _pad2(w_sh, latent_dim, n_p),
                            _pad2(w_s2, latent_dim, n_p)], axis=-1)
    bc2f = jnp.concatenate([_pad2(b_s1, 1, n_p),
                            _pad2(b_sh, 1, n_p),
                            _pad2(b_s2, 1, n_p)], axis=-1)

    weights = (
        _pad2(wc1, c_p, l_p).astype(matmul_dtype), _pad2(bc1, 1, l_p).astype(jnp.float32),
        _pad2(wc2f, l_p, 3 * n_p).astype(matmul_dtype), bc2f.astype(jnp.float32),
        _pad2(wm1, n_p, l_p).astype(matmul_dtype), _pad2(bm1, 1, l_p).astype(jnp.float32),
        _pad2(wm2, l_p, n_p).astype(matmul_dtype), _pad2(bm2, 1, n_p).astype(jnp.float32),
    )
    weights = jax.tree_util.tree_map(jax.block_until_ready, weights)
    return weights, (noise_dim, n_p, c_p, l_p)


def _nbytes(a):
    return a.size * a.dtype.itemsize


def _vmem_estimate(tb, n_p, c_p, l_p, weight_bytes, io_itemsize):
    io = 2 * tb * (n_p + c_p + n_p) * io_itemsize          # double-buffered x/cond/out
    interm = 6 * tb * max(l_p, 3 * n_p) * 4                 # live f32 slabs (h/sss/y/...)
    return weight_bytes + io + interm


# ---------------------------------------------------------------------------
# Forward wrapper
# ---------------------------------------------------------------------------
def conditioned_residual_mlp(x, condition, prepared, *, batch_tile=512, min_grid=8):
    """Pallas forward matching ConditionedResidualMlp.forward(x, condition)."""
    weights, (noise_dim, n_p, c_p, l_p) = prepared
    batch = x.shape[0]
    weight_bytes = sum(_nbytes(w) for w in weights)
    io_itemsize = max(x.dtype.itemsize, 4)

    # --- tile selection: minimize pad, tb multiple of 8, aim for >= min_grid steps ---
    target_tiles = max(pl.cdiv(batch, batch_tile), min_grid)
    target_tiles = max(1, min(target_tiles, pl.cdiv(batch, _SUBLANE)))
    tb = _round_up(pl.cdiv(batch, target_tiles), _SUBLANE)
    # shrink tile until estimated VMEM footprint fits the budget (v7x-safe)
    while tb > _SUBLANE and _vmem_estimate(tb, n_p, c_p, l_p, weight_bytes,
                                           io_itemsize) > _VMEM_BUDGET:
        tb = max(_SUBLANE, _round_up(tb // 2, _SUBLANE))
    b_p = _round_up(batch, tb)
    grid = b_p // tb

    x_p = _pad2(x, b_p, n_p)
    cond_p = _pad2(condition, b_p, c_p)

    vmem_limit = int(min(max(_vmem_estimate(tb, n_p, c_p, l_p, weight_bytes, io_itemsize)
                             + (8 << 20), 32 << 20), 64 << 20))

    flops = 2 * b_p * (c_p * l_p + l_p * 3 * n_p + n_p * l_p + l_p * n_p)
    transcendentals = b_p * 2 * l_p                          # two SiLU sigmoids
    bytes_accessed = (_nbytes(x_p) + _nbytes(cond_p) + weight_bytes
                      + b_p * n_p * x.dtype.itemsize)

    def row_spec(lanes):
        return pl.BlockSpec((tb, lanes), lambda i: (i, 0))

    def const_spec(a):
        # Weights are DMA'd once; single-buffer them to halve resident weight VMEM.
        return pl.BlockSpec(a.shape, lambda i: (0, 0), pipeline_mode=pl.Buffered(1))

    out = pl.pallas_call(
        functools.partial(_crm_kernel, noise_dim=noise_dim, n_pad=n_p),
        out_shape=jax.ShapeDtypeStruct((b_p, n_p), x.dtype),
        grid=(grid,),
        in_specs=[row_spec(n_p), row_spec(c_p)] + [const_spec(w) for w in weights],
        out_specs=row_spec(n_p),
        compiler_params=pltpu.CompilerParams(
            dimension_semantics=("parallel",),
            vmem_limit_bytes=vmem_limit),
        cost_estimate=pl.CostEstimate(flops=flops, transcendentals=transcendentals,
                                      bytes_accessed=bytes_accessed),
    )(x_p, cond_p, *weights)

    if (b_p, n_p) != (batch, noise_dim):
        out = out[:batch, :noise_dim]
    return out


# ---------------------------------------------------------------------------
# Synthetic params + pure-JAX reference
# ---------------------------------------------------------------------------
def init_params(key, noise_dim, cond_dim, latent_dim, dtype=jnp.float32):
    """Deterministic synthetic params. Weights are [in, out]; biases are [1, out]."""
    ks = jax.random.split(key, 8)

    def w(k, shape, fan_in):
        return (jax.random.normal(k, shape, dtype) * (1.0 / jnp.sqrt(fan_in))).astype(dtype)

    wc1 = w(ks[0], (cond_dim, latent_dim), cond_dim)
    bc1 = w(ks[1], (1, latent_dim), latent_dim)
    wc2 = w(ks[2], (latent_dim, 3 * noise_dim), latent_dim)
    bc2 = w(ks[3], (1, 3 * noise_dim), latent_dim)
    wm1 = w(ks[4], (noise_dim, latent_dim), noise_dim)
    bm1 = w(ks[5], (1, latent_dim), latent_dim)
    wm2 = w(ks[6], (latent_dim, noise_dim), latent_dim)
    bm2 = w(ks[7], (1, noise_dim), latent_dim)
    return (wc1, bc1, wc2, bc2, wm1, bm1, wm2, bm2)


def reference_forward(x, condition, params, num_blocks):
    """Pure-JAX f32 reference mirroring the PyTorch module."""
    (wc1, bc1, wc2, bc2, wm1, bm1, wm2, bm2) = params
    residual = x
    mean = jnp.mean(x, axis=-1, keepdims=True)
    var = jnp.mean((x - mean) ** 2, axis=-1, keepdims=True)
    xn = (x - mean) / jnp.sqrt(var + 1e-5)
    h = _silu(condition @ wc1 + bc1)
    sss = h @ wc2 + bc2
    n = x.shape[-1]
    scale1, shift, scale2 = sss[:, :n], sss[:, n:2 * n], sss[:, 2 * n:]
    y = _silu((scale1 * xn + shift) @ wm1 + bm1) @ wm2 + bm2
    y = y * scale2
    return y / num_blocks + residual


if __name__ == "__main__":
    noise_dim, cond_dim, latent_dim, num_blocks = 16, 8, 32, 3
    batch = 8

    key = jax.random.PRNGKey(0)
    kx, kc, kp = jax.random.split(key, 3)
    x = jax.random.normal(kx, (batch, noise_dim), jnp.float32)
    condition = jax.random.normal(kc, (batch, cond_dim), jnp.float32)
    params = init_params(kp, noise_dim, cond_dim, latent_dim)

    prepared = prepare_params(params, num_blocks, noise_dim, cond_dim, latent_dim)
    out = conditioned_residual_mlp(x, condition, prepared)
    out = jax.block_until_ready(out)

    ref = reference_forward(x, condition, params, num_blocks)
    assert out.shape == (batch, noise_dim)
    # bf16 MXU operands -> loosened tolerance vs the f32 reference.
    assert jnp.allclose(out, ref, atol=3e-2, rtol=3e-2), "mismatch vs reference"

    print("KERNEL_OK")
</pallas_src>

<mosaic_0001>
module attributes {stable_mosaic.version = 11 : i64} {
  func.func @_crm_kernel(%arg0: i32, %arg1: memref<8x128xf32, #tpu.memory_space<vmem>>, %arg2: memref<8x128xf32, #tpu.memory_space<vmem>>, %arg3: memref<128x128xbf16, #tpu.memory_space<vmem>>, %arg4: memref<1x128xf32, #tpu.memory_space<vmem>>, %arg5: memref<128x384xbf16, #tpu.memory_space<vmem>>, %arg6: memref<1x384xf32, #tpu.memory_space<vmem>>, %arg7: memref<128x128xbf16, #tpu.memory_space<vmem>>, %arg8: memref<1x128xf32, #tpu.memory_space<vmem>>, %arg9: memref<128x128xbf16, #tpu.memory_space<vmem>>, %arg10: memref<1x128xf32, #tpu.memory_space<vmem>>, %arg11: memref<8x128xf32, #tpu.memory_space<vmem>>) attributes {dimension_semantics = [#tpu.dimension_semantics<parallel>], iteration_bounds = array<i64: 1>, scalar_prefetch = 0 : i64, scratch_operands = 0 : i64, tpu.core_type = #tpu.core_type<tc>, window_params = [{transform_indices = @transform_0, window_bounds = array<i64: 8, 128>}, {transform_indices = @transform_1, window_bounds = array<i64: 8, 128>}, {pipeline_mode = #tpu.pipeline_mode<synchronous>, transform_indices = @transform_2, window_bounds = array<i64: 128, 128>}, {pipeline_mode = #tpu.pipeline_mode<synchronous>, transform_indices = @transform_3, window_bounds = array<i64: 1, 128>}, {pipeline_mode = #tpu.pipeline_mode<synchronous>, transform_indices = @transform_4, window_bounds = array<i64: 128, 384>}, {pipeline_mode = #tpu.pipeline_mode<synchronous>, transform_indices = @transform_5, window_bounds = array<i64: 1, 384>}, {pipeline_mode = #tpu.pipeline_mode<synchronous>, transform_indices = @transform_6, window_bounds = array<i64: 128, 128>}, {pipeline_mode = #tpu.pipeline_mode<synchronous>, transform_indices = @transform_7, window_bounds = array<i64: 1, 128>}, {pipeline_mode = #tpu.pipeline_mode<synchronous>, transform_indices = @transform_8, window_bounds = array<i64: 128, 128>}, {pipeline_mode = #tpu.pipeline_mode<synchronous>, transform_indices = @transform_9, window_bounds = array<i64: 1, 128>}, {transform_indices = @transform_10, window_bounds = array<i64: 8, 128>}]} {
    %c0 = arith.constant 0 : index
    %c0_0 = arith.constant 0 : index
    %0 = vector.load %arg1[%c0, %c0_0] : memref<8x128xf32, #tpu.memory_space<vmem>>, vector<8x128xf32>
    %cst = arith.constant dense<0.000000e+00> : vector<8xf32>
    %1 = vector.multi_reduction <add>, %0, %cst [1] : vector<8x128xf32> to vector<8xf32>
    %2 = vector.shape_cast %1 : vector<8xf32> to vector<8x1xf32>
    %cst_1 = arith.constant 6.250000e-02 : f32
    %3 = vector.broadcast %cst_1 : f32 to vector<8x1xf32>
    %4 = arith.mulf %2, %3 : vector<8x1xf32>
    %5 = vector.broadcast %4 : vector<8x1xf32> to vector<8x128xf32>
    %6 = arith.subf %0, %5 : vector<8x128xf32>
    %7 = tpu.iota {dimensions = array<i32: 1>} : vector<1x128xi32>
    %c16_i32 = arith.constant 16 : i32
    %8 = vector.broadcast %c16_i32 : i32 to vector<1x128xi32>
    %9 = arith.cmpi slt, %7, %8 : vector<1x128xi32>
    %cst_2 = arith.constant 0.000000e+00 : f32
    %10 = vector.shape_cast %9 : vector<1x128xi1> to vector<1x128xi1>
    %11 = vector.broadcast %10 : vector<1x128xi1> to vector<8x128xi1>
    %12 = vector.broadcast %cst_2 : f32 to vector<8x128xf32>
    %13 = arith.select %11, %6, %12 : vector<8x128xi1>, vector<8x128xf32>
    %14 = arith.mulf %13, %13 : vector<8x128xf32>
    %cst_3 = arith.constant dense<0.000000e+00> : vector<8xf32>
    %15 = vector.multi_reduction <add>, %14, %cst_3 [1] : vector<8x128xf32> to vector<8xf32>
    %16 = vector.shape_cast %15 : vector<8xf32> to vector<8x1xf32>
    %cst_4 = arith.constant 6.250000e-02 : f32
    %17 = vector.broadcast %cst_4 : f32 to vector<8x1xf32>
    %18 = arith.mulf %16, %17 : vector<8x1xf32>
    %cst_5 = arith.constant 9.99999974E-6 : f32
    %19 = vector.broadcast %cst_5 : f32 to vector<8x1xf32>
    %20 = arith.addf %18, %19 : vector<8x1xf32>
    %21 = math.rsqrt %20 : vector<8x1xf32>
    %22 = vector.broadcast %21 : vector<8x1xf32> to vector<8x128xf32>
    %23 = arith.mulf %13, %22 : vector<8x128xf32>
    %c0_6 = arith.constant 0 : index
    %c0_7 = arith.constant 0 : index
    %24 = vector.load %arg2[%c0_6, %c0_7] : memref<8x128xf32, #tpu.memory_space<vmem>>, vector<8x128xf32>
    %25 = arith.truncf %24 : vector<8x128xf32> to vector<8x128xbf16>
    %c0_8 = arith.constant 0 : index
    %c0_9 = arith.constant 0 : index
    %26 = vector.load %arg3[%c0_8, %c0_9] : memref<128x128xbf16, #tpu.memory_space<vmem>>, vector<128x128xbf16>
    %cst_10 = arith.constant dense<0.000000e+00> : vector<8x128xf32>
    %27 = tpu.matmul %25, %26, %cst_10 {dimension_numbers = #tpu.dot_dimension_numbers<[1], [0], [0], [1], [0, 0, 1, 1], [], []>} : vector<8x128xbf16>, vector<128x128xbf16>, vector<8x128xf32> -> vector<8x128xf32>
    %c0_11 = arith.constant 0 : index
    %c0_12 = arith.constant 0 : index
    %28 = vector.load %arg4[%c0_11, %c0_12] : memref<1x128xf32, #tpu.memory_space<vmem>>, vector<1x128xf32>
    %29 = vector.broadcast %28 : vector<1x128xf32> to vector<8x128xf32>
    %30 = arith.addf %27, %29 : vector<8x128xf32>
    %31 = arith.negf %30 : vector<8x128xf32>
    %32 = math.exp %31 : vector<8x128xf32>
    %cst_13 = arith.constant 1.000000e+00 : f32
    %33 = vector.broadcast %cst_13 : f32 to vector<8x128xf32>
    %34 = arith.addf %33, %32 : vector<8x128xf32>
    %35 = arith.divf %33, %34 : vector<8x128xf32>
    %36 = arith.mulf %30, %35 : vector<8x128xf32>
    %37 = arith.truncf %36 : vector<8x128xf32> to vector<8x128xbf16>
    %c0_14 = arith.constant 0 : index
    %c0_15 = arith.constant 0 : index
    %38 = vector.load %arg5[%c0_14, %c0_15] : memref<128x384xbf16, #tpu.memory_space<vmem>>, vector<128x384xbf16>
    %cst_16 = arith.constant dense<0.000000e+00> : vector<8x384xf32>
    %39 = tpu.matmul %37, %38, %cst_16 {dimension_numbers = #tpu.dot_dimension_numbers<[1], [0], [0], [1], [0, 0, 1, 1], [], []>} : vector<8x128xbf16>, vector<128x384xbf16>, vector<8x384xf32> -> vector<8x384xf32>
    %c0_17 = arith.constant 0 : index
    %c0_18 = arith.constant 0 : index
    %40 = vector.load %arg6[%c0_17, %c0_18] : memref<1x384xf32, #tpu.memory_space<vmem>>, vector<1x384xf32>
    %41 = vector.broadcast %40 : vector<1x384xf32> to vector<8x384xf32>
    %42 = arith.addf %39, %41 : vector<8x384xf32>
    %43 = vector.extract_strided_slice %42 {offsets = [0, 0], sizes = [8, 128], strides = [1, 1]} : vector<8x384xf32> to vector<8x128xf32>
    %44 = vector.extract_strided_slice %42 {offsets = [0, 128], sizes = [8, 128], strides = [1, 1]} : vector<8x384xf32> to vector<8x128xf32>
    %45 = vector.extract_strided_slice %42 {offsets = [0, 256], sizes = [8, 128], strides = [1, 1]} : vector<8x384xf32> to vector<8x128xf32>
    %46 = arith.mulf %43, %23 : vector<8x128xf32>
    %47 = arith.addf %46, %44 : vector<8x128xf32>
    %48 = arith.truncf %47 : vector<8x128xf32> to vector<8x128xbf16>
    %c0_19 = arith.constant 0 : index
    %c0_20 = arith.constant 0 : index
    %49 = vector.load %arg7[%c0_19, %c0_20] : memref<128x128xbf16, #tpu.memory_space<vmem>>, vector<128x128xbf16>
    %cst_21 = arith.constant dense<0.000000e+00> : vector<8x128xf32>
    %50 = tpu.matmul %48, %49, %cst_21 {dimension_numbers = #tpu.dot_dimension_numbers<[1], [0], [0], [1], [0, 0, 1, 1], [], []>} : vector<8x128xbf16>, vector<128x128xbf16>, vector<8x128xf32> -> vector<8x128xf32>
    %c0_22 = arith.constant 0 : index
    %c0_23 = arith.constant 0 : index
    %51 = vector.load %arg8[%c0_22, %c0_23] : memref<1x128xf32, #tpu.memory_space<vmem>>, vector<1x128xf32>
    %52 = vector.broadcast %51 : vector<1x128xf32> to vector<8x128xf32>
    %53 = arith.addf %50, %52 : vector<8x128xf32>
    %54 = arith.negf %53 : vector<8x128xf32>
    %55 = math.exp %54 : vector<8x128xf32>
    %cst_24 = arith.constant 1.000000e+00 : f32
    %56 = vector.broadcast %cst_24 : f32 to vector<8x128xf32>
    %57 = arith.addf %56, %55 : vector<8x128xf32>
    %58 = arith.divf %56, %57 : vector<8x128xf32>
    %59 = arith.mulf %53, %58 : vector<8x128xf32>
    %60 = arith.truncf %59 : vector<8x128xf32> to vector<8x128xbf16>
    %c0_25 = arith.constant 0 : index
    %c0_26 = arith.constant 0 : index
    %61 = vector.load %arg9[%c0_25, %c0_26] : memref<128x128xbf16, #tpu.memory_space<vmem>>, vector<128x128xbf16>
    %cst_27 = arith.constant dense<0.000000e+00> : vector<8x128xf32>
    %62 = tpu.matmul %60, %61, %cst_27 {dimension_numbers = #tpu.dot_dimension_numbers<[1], [0], [0], [1], [0, 0, 1, 1], [], []>} : vector<8x128xbf16>, vector<128x128xbf16>, vector<8x128xf32> -> vector<8x128xf32>
    %c0_28 = arith.constant 0 : index
    %c0_29 = arith.constant 0 : index
    %63 = vector.load %arg10[%c0_28, %c0_29] : memref<1x128xf32, #tpu.memory_space<vmem>>, vector<1x128xf32>
    %64 = vector.broadcast %63 : vector<1x128xf32> to vector<8x128xf32>
    %65 = arith.addf %62, %64 : vector<8x128xf32>
    %66 = arith.mulf %65, %45 : vector<8x128xf32>
    %c0_30 = arith.constant 0 : index
    %c0_31 = arith.constant 0 : index
    %67 = vector.load %arg1[%c0_30, %c0_31] : memref<8x128xf32, #tpu.memory_space<vmem>>, vector<8x128xf32>
    %68 = arith.addf %66, %67 : vector<8x128xf32>
    %c0_32 = arith.constant 0 : index
    %c0_33 = arith.constant 0 : index
    %69 = vector.load %arg11[%c0_32, %c0_33] : memref<8x128xf32, #tpu.memory_space<vmem>>, vector<8x128xf32>
    tpu.vector_store %arg11[%c0_32, %c0_33], %68 {strides = array<i32>} : memref<8x128xf32, #tpu.memory_space<vmem>>, vector<8x128xf32>,
    return
  }
  func.func @transform_0(%arg0: i32) -> (i32, i32) {
    %c0_i32 = arith.constant 0 : i32
    %c0_i32_0 = arith.constant 0 : i32
    return %arg0, %c0_i32 : i32, i32
  }
  func.func @transform_1(%arg0: i32) -> (i32, i32) {
    %c0_i32 = arith.constant 0 : i32
    %c0_i32_0 = arith.constant 0 : i32
    return %arg0, %c0_i32 : i32, i32
  }
  func.func @transform_2(%arg0: i32) -> (i32, i32) {
    %c0_i32 = arith.constant 0 : i32
    %c0_i32_0 = arith.constant 0 : i32
    %c0_i32_1 = arith.constant 0 : i32
    return %c0_i32, %c0_i32_0 : i32, i32
  }
  func.func @transform_3(%arg0: i32) -> (i32, i32) {
    %c0_i32 = arith.constant 0 : i32
    %c0_i32_0 = arith.constant 0 : i32
    %c0_i32_1 = arith.constant 0 : i32
    return %c0_i32, %c0_i32_0 : i32, i32
  }
  func.func @transform_4(%arg0: i32) -> (i32, i32) {
    %c0_i32 = arith.constant 0 : i32
    %c0_i32_0 = arith.constant 0 : i32
    %c0_i32_1 = arith.constant 0 : i32
    return %c0_i32, %c0_i32_0 : i32, i32
  }
  func.func @transform_5(%arg0: i32) -> (i32, i32) {
    %c0_i32 = arith.constant 0 : i32
    %c0_i32_0 = arith.constant 0 : i32
    %c0_i32_1 = arith.constant 0 : i32
    return %c0_i32, %c0_i32_0 : i32, i32
  }
  func.func @transform_6(%arg0: i32) -> (i32, i32) {
    %c0_i32 = arith.constant 0 : i32
    %c0_i32_0 = arith.constant 0 : i32
    %c0_i32_1 = arith.constant 0 : i32
    return %c0_i32, %c0_i32_0 : i32, i32
  }
  func.func @transform_7(%arg0: i32) -> (i32, i32) {
    %c0_i32 = arith.constant 0 : i32
    %c0_i32_0 = arith.constant 0 : i32
    %c0_i32_1 = arith.constant 0 : i32
    return %c0_i32, %c0_i32_0 : i32, i32
  }
  func.func @transform_8(%arg0: i32) -> (i32, i32) {
    %c0_i32 = arith.constant 0 : i32
    %c0_i32_0 = arith.constant 0 : i32
    %c0_i32_1 = arith.constant 0 : i32
    return %c0_i32, %c0_i32_0 : i32, i32
  }
  func.func @transform_9(%arg0: i32) -> (i32, i32) {
    %c0_i32 = arith.constant 0 : i32
    %c0_i32_0 = arith.constant 0 : i32
    %c0_i32_1 = arith.constant 0 : i32
    return %c0_i32, %c0_i32_0 : i32, i32
  }
  func.func @transform_10(%arg0: i32) -> (i32, i32) {
    %c0_i32 = arith.constant 0 : i32
    %c0_i32_0 = arith.constant 0 : i32
    return %arg0, %c0_i32 : i32, i32
  }
}

</mosaic_0001>

<llo_original>
// kernel: tpu_custom_call.1
$region0: #{tpu_custom_call.1}
  #allocation0 [shape = 'u32[]', space=smem, size = 0x4, offset = 0x4, fixed_abs, tag = 'smem constant byte address 0x4 - core index']
  #allocation1 [shape = 'u32[144,128]{1,0:T(1,128)}', space=vmem, size = 0x12000, scoped, tag = 'internal scratch']
  %s0 = inlined_call_operand.hbm [shape: f32[8,128], index: 0, kind: input, shape index: {}]
  %s1 = inlined_call_operand.hbm [shape: f32[8,128], index: 1, kind: input, shape index: {}]
  %s2 = inlined_call_operand.hbm [shape: bf16[128,128], index: 2, kind: input, shape index: {}]
  %s3 = inlined_call_operand.vmem [shape: f32[1,128], index: 3, kind: input, shape index: {}]
  %s4 = inlined_call_operand.hbm [shape: bf16[128,384], index: 4, kind: input, shape index: {}]
  %s5 = inlined_call_operand.vmem [shape: f32[1,384], index: 5, kind: input, shape index: {}]
  %s6 = inlined_call_operand.hbm [shape: bf16[128,128], index: 6, kind: input, shape index: {}]
  %s7 = inlined_call_operand.vmem [shape: f32[1,128], index: 7, kind: input, shape index: {}]
  %s8 = inlined_call_operand.hbm [shape: bf16[128,128], index: 8, kind: input, shape index: {}]
  %s9 = inlined_call_operand.vmem [shape: f32[1,128], index: 9, kind: input, shape index: {}]
  %s10 = inlined_call_operand.hbm [shape: f32[8,128], index: 10, kind: output, shape index: {}]
  %s11 = sld [smem:[#allocation0]]
  $region74: #{tpu_custom_call.1} parent=0
    _
  %s13 = ssub.s32 1, %s11
  %s14 = scalar_select 0, %s13, %s11
  $region1: #{tpu_custom_call.1} parent=0
    #allocation2 [shape = 'u8[4096]{0}', space=vmem, size = 0x1000, scoped, tag = 'input window, operand 0, single buffered']
    #allocation3 [shape = 's32[1]{0}', space=sflag, size = 0x4, scoped, tag = 'scoped memory for tpu_custom_call.1']
    #allocation4 [shape = 's32[1]{0}', space=sflag, size = 0x4, scoped, tag = 'scoped memory for tpu_custom_call.1']
    #allocation5 [shape = 'u8[4096]{0}', space=vmem, size = 0x1000, scoped, tag = 'input window, operand 1, single buffered']
    #allocation6 [shape = 's32[1]{0}', space=sflag, size = 0x4, scoped, tag = 'scoped memory for tpu_custom_call.1']
    #allocation7 [shape = 'u8[32768]{0}', space=vmem, size = 0x8000, scoped, tag = 'input window, operand 2, single buffered']
    #allocation8 [shape = 'u8[98304]{0}', space=vmem, size = 0x18000, scoped, tag = 'input window, operand 4, single buffered']
    #allocation9 [shape = 's32[1]{0}', space=sflag, size = 0x4, scoped, tag = 'scoped memory for tpu_custom_call.1']
    #allocation10 [shape = 'u8[32768]{0}', space=vmem, size = 0x8000, scoped, tag = 'input window, operand 6, single buffered']
    #allocation11 [shape = 'u8[32768]{0}', space=vmem, size = 0x8000, scoped, tag = 'input window, operand 8, single buffered']
    #allocation12 [shape = 's32[1]{0}', space=sflag, size = 0x4, scoped, tag = 'scoped memory for tpu_custom_call.1']
    #allocation13 [shape = 'u8[4096]{0}', space=vmem, size = 0x1000, scoped, tag = 'output window, operand 0, single buffered']
    %15 = vsyncpa [#allocation3], 0
    %16 = vsyncpa [#allocation6], 0
    %17 = vsyncpa [#allocation9], 0
    %18 = vsyncpa [#allocation12], 0
    %19 = vsyncpa [#allocation4], 0
    // Predicated region
    $region2: #{tpu_custom_call.1} parent=1 // pred_check
      _
    $region3: #{tpu_custom_call.1} parent=1 // pred_check_branch
      %21 = sbr.rel (0) target = $region5
    $region4: #{tpu_custom_call.1} parent=1 // pred_region
      %s23 = ssub.s32 128, 128
      %24 = vsyncadd [#allocation3], %s23
      %s26 = sshll.u32 [#allocation2], 4
      %s27 = int_to_ptr.vmem [resolvable:$true] %s26
      %29 = dma.hbm_to_vmem [thread:$0]  %s0, 128, %s27, [#allocation3]
    $region5: #{tpu_custom_call.1} parent=1 // pred_fallthru
      _
    // Predicated region
    $region6: #{tpu_custom_call.1} parent=1 // pred_check
      _
    $region7: #{tpu_custom_call.1} parent=1 // pred_check_branch
      %31 = sbr.rel (0) target = $region9
    $region8: #{tpu_custom_call.1} parent=1 // pred_region
      %s33 = ssub.s32 128, 128
      %34 = vsyncadd [#allocation6], %s33
      %s36 = sshll.u32 [#allocation5], 4
      %s37 = int_to_ptr.vmem [resolvable:$true] %s36
      %39 = dma.hbm_to_vmem [thread:$0]  %s1, 128, %s37, [#allocation6]
    $region9: #{tpu_custom_call.1} parent=1 // pred_fallthru
      _
    // Predicated region
    $region10: #{tpu_custom_call.1} parent=1 // pred_check
      _
    $region11: #{tpu_custom_call.1} parent=1 // pred_check_branch
      %41 = sbr.rel (0) target = $region13
    $region12: #{tpu_custom_call.1} parent=1 // pred_region
      %s43 = ssub.s32 1024, 1024
      %44 = vsyncadd [#allocation6], %s43
      %s45 = sshll.u32 [#allocation7], 4
      %s46 = int_to_ptr.vmem [resolvable:$true] %s45
      %51 = dma.hbm_to_vmem [thread:$0]  %s2, 1024, %s46, [#allocation6], 64, 64, 4
    $region13: #{tpu_custom_call.1} parent=1 // pred_fallthru
      _
    // Predicated region
    $region14: #{tpu_custom_call.1} parent=1 // pred_check
      _
    $region15: #{tpu_custom_call.1} parent=1 // pred_check_branch
      %53 = sbr.rel (0) target = $region17
    $region16: #{tpu_custom_call.1} parent=1 // pred_region
      _
    $region17: #{tpu_custom_call.1} parent=1 // pred_fallthru
      _
    // Predicated region
    $region18: #{tpu_custom_call.1} parent=1 // pred_check
      _
    $region19: #{tpu_custom_call.1} parent=1 // pred_check_branch
      %55 = sbr.rel (0) target = $region21
    $region20: #{tpu_custom_call.1} parent=1 // pred_region
      %s57 = ssub.s32 3072, 3072
      %58 = vsyncadd [#allocation9], %s57
      %s59 = sshll.u32 [#allocation8], 4
      %s60 = int_to_ptr.vmem [resolvable:$true] %s59
      %65 = dma.hbm_to_vmem [thread:$0]  %s4, 3072, %s60, [#allocation9], 192, 192, 12
    $region21: #{tpu_custom_call.1} parent=1 // pred_fallthru
      _
    // Predicated region
    $region22: #{tpu_custom_call.1} parent=1 // pred_check
      _
    $region23: #{tpu_custom_call.1} parent=1 // pred_check_branch
      %67 = sbr.rel (0) target = $region25
    $region24: #{tpu_custom_call.1} parent=1 // pred_region
      _
    $region25: #{tpu_custom_call.1} parent=1 // pred_fallthru
      _
    // Predicated region
    $region26: #{tpu_custom_call.1} parent=1 // pred_check
      _
    $region27: #{tpu_custom_call.1} parent=1 // pred_check_branch
      %69 = sbr.rel (0) target = $region29
    $region28: #{tpu_custom_call.1} parent=1 // pred_region
      %s71 = ssub.s32 1024, 1024
      %72 = vsyncadd [#allocation9], %s71
      %s73 = sshll.u32 [#allocation10], 4
      %s74 = int_to_ptr.vmem [resolvable:$true] %s73
      %79 = dma.hbm_to_vmem [thread:$0]  %s6, 1024, %s74, [#allocation9], 64, 64, 4
    $region29: #{tpu_custom_call.1} parent=1 // pred_fallthru
      _
    // Predicated region
    $region30: #{tpu_custom_call.1} parent=1 // pred_check
      _
    $region31: #{tpu_custom_call.1} parent=1 // pred_check_branch
      %81 = sbr.rel (0) target = $region33
    $region32: #{tpu_custom_call.1} parent=1 // pred_region
      _
    $region33: #{tpu_custom_call.1} parent=1 // pred_fallthru
      _
    // Predicated region
    $region34: #{tpu_custom_call.1} parent=1 // pred_check
      _
    $region35: #{tpu_custom_call.1} parent=1 // pred_check_branch
      %83 = sbr.rel (0) target = $region37
    $region36: #{tpu_custom_call.1} parent=1 // pred_region
      %s85 = ssub.s32 1024, 1024
      %86 = vsyncadd [#allocation12], %s85
      %s87 = sshll.u32 [#allocation11], 4
      %s88 = int_to_ptr.vmem [resolvable:$true] %s87
      %93 = dma.hbm_to_vmem [thread:$0]  %s8, 1024, %s88, [#allocation12], 64, 64, 4
    $region37: #{tpu_custom_call.1} parent=1 // pred_fallthru
      _
    // Predicated region
    $region38: #{tpu_custom_call.1} parent=1 // pred_check
      _
    $region39: #{tpu_custom_call.1} parent=1 // pred_check_branch
      %95 = sbr.rel (0) target = $region41
    $region40: #{tpu_custom_call.1} parent=1 // pred_region
      _
    $region41: #{tpu_custom_call.1} parent=1 // pred_fallthru
      _
    // Predicated region
    $region42: #{tpu_custom_call.1} parent=1 // pred_check
      _
    $region43: #{tpu_custom_call.1} parent=1 // pred_check_branch
      %97 = sbr.rel (0) target = $region45
    $region44: #{tpu_custom_call.1} parent=1 // pred_region
      %98 = dma.done [#allocation3], 128
    $region45: #{tpu_custom_call.1} parent=1 // pred_fallthru
      _
    // Predicated region
    $region46: #{tpu_custom_call.1} parent=1 // pred_check
      _
    $region47: #{tpu_custom_call.1} parent=1 // pred_check_branch
      %100 = sbr.rel (0) target = $region49
    $region48: #{tpu_custom_call.1} parent=1 // pred_region
      %101 = dma.done [#allocation6], 128
    $region49: #{tpu_custom_call.1} parent=1 // pred_fallthru
      _
    // Predicated region
    $region50: #{tpu_custom_call.1} parent=1 // pred_check
      _
    $region51: #{tpu_custom_call.1} parent=1 // pred_check_branch
      %103 = sbr.rel (0) target = $region53
    $region52: #{tpu_custom_call.1} parent=1 // pred_region
      %104 = dma.done [#allocation6], 1024
    $region53: #{tpu_custom_call.1} parent=1 // pred_fallthru
      _
    // Predicated region
    $region54: #{tpu_custom_call.1} parent=1 // pred_check
      _
    $region55: #{tpu_custom_call.1} parent=1 // pred_check_branch
      %106 = sbr.rel (0) target = $region57
    $region56: #{tpu_custom_call.1} parent=1 // pred_region
      %107 = dma.done [#allocation9], 3072
    $region57: #{tpu_custom_call.1} parent=1 // pred_fallthru
      _
    // Predicated region
    $region58: #{tpu_custom_call.1} parent=1 // pred_check
      _
    $region59: #{tpu_custom_call.1} parent=1 // pred_check_branch
      %109 = sbr.rel (0) target = $region61
    $region60: #{tpu_custom_call.1} parent=1 // pred_region
      %110 = dma.done [#allocation9], 1024
    $region61: #{tpu_custom_call.1} parent=1 // pred_fallthru
      _
    // Predicated region
    $region62: #{tpu_custom_call.1} parent=1 // pred_check
      _
    $region63: #{tpu_custom_call.1} parent=1 // pred_check_branch
      %112 = sbr.rel (0) target = $region65
    $region64: #{tpu_custom_call.1} parent=1 // pred_region
      %113 = dma.done [#allocation12], 1024
    $region65: #{tpu_custom_call.1} parent=1 // pred_fallthru
      _
    %v115 = vld [vmem:[#allocation2] sm:$0xff]
    %116 = vadd.xlane.f32.xlu0 %v115
    %v117 = vpop.xlane.xlu0 %116
    %v118 = vmul.f32 %v117, 0.0625
    %v119 = vsub.f32 %v115, %v118
    %v120 = vlaneseq
    %v121 = vand.u32 %v120, 127
    %vm122 = vcmp.lt.s32.totalorder %v121, 16
    %v123 = vsel %vm122, 1, 0
    %vm124 = vcmp.eq.s32.totalorder %v123, 1
    %v125 = vsel %vm124, %v119, 0.0
    %v126 = vmul.f32 %v125, %v125
    %127 = vadd.xlane.f32.xlu0 %v126
    %v128 = vpop.xlane.xlu0 %127
    %v129 = vmul.f32 %v128, 0.0625
    %v130 = vadd.f32 %v129, 1e-05
    %v131 = vrsqrt.pop %v130
    %v132 = vmul.f32 %v125, %v131
    %v133 = vld [vmem:[#allocation5] sm:$0xff]
    %v134 = vpack.c.bf16 %v133, %v133
    %v135 = vld [vmem:[#allocation7] sm:$0xf]
    %v136 = vld [vmem:[#allocation7 + $0x4] sm:$0xf]
    %v137 = vld [vmem:[#allocation7 + $0x8] sm:$0xf]
    %v138 = vld [vmem:[#allocation7 + $0xc] sm:$0xf]
    %v139 = vld [vmem:[#allocation7 + $0x10] sm:$0xf]
    %v140 = vld [vmem:[#allocation7 + $0x14] sm:$0xf]
    %v141 = vld [vmem:[#allocation7 + $0x18] sm:$0xf]
    %v142 = vld [vmem:[#allocation7 + $0x1c] sm:$0xf]
    %v143 = vld [vmem:[#allocation7 + $0x20] sm:$0xf]
    %v144 = vld [vmem:[#allocation7 + $0x24] sm:$0xf]
    %v145 = vld [vmem:[#allocation7 + $0x28] sm:$0xf]
    %v146 = vld [vmem:[#allocation7 + $0x2c] sm:$0xf]
    %v147 = vld [vmem:[#allocation7 + $0x30] sm:$0xf]
    %v148 = vld [vmem:[#allocation7 + $0x34] sm:$0xf]
    %v149 = vld [vmem:[#allocation7 + $0x38] sm:$0xf]
    %v150 = vld [vmem:[#allocation7 + $0x3c] sm:$0xf]
    %v151 = vld [vmem:[%s3] sm:$0x1]
    %v153 = vlaneseq
    %v154 = vshrl.u32 %v153, 7
    %v155 = vsub.s32 0, %v154
    %v156 = vrot.slane %v151, %v155
    %v174 = vunpack.c.l.b16 %v135
    %v175 = vunpack.c.l.b16 %v136
    %v176 = vunpack.c.l.b16 %v137
    %v177 = vunpack.c.l.b16 %v138
    %v178 = vunpack.c.l.b16 %v139
    %v179 = vunpack.c.l.b16 %v140
    %v180 = vunpack.c.l.b16 %v141
    %v181 = vunpack.c.l.b16 %v142
    %v182 = vunpack.c.l.b16 %v143
    %v183 = vunpack.c.l.b16 %v144
    %v184 = vunpack.c.l.b16 %v145
    %v185 = vunpack.c.l.b16 %v146
    %v186 = vunpack.c.l.b16 %v147
    %v187 = vunpack.c.l.b16 %v148
    %v188 = vunpack.c.l.b16 %v149
    %v189 = vunpack.c.l.b16 %v150
    %v190 = vpack.c.b16 %v175, %v174
    %v191 = vpack.c.b16 %v177, %v176
    %v192 = vpack.c.b16 %v179, %v178
    %v193 = vpack.c.b16 %v181, %v180
    %v194 = vpack.c.b16 %v183, %v182
    %v195 = vpack.c.b16 %v185, %v184
    %v196 = vpack.c.b16 %v187, %v186
    %v197 = vpack.c.b16 %v189, %v188
    %206 = vmatprep.subr.bf16.mxu0 0
    %207 = vmatpush1.bf16.msra.mxu0 %v190
    %208 = vmatprep.subr.bf16.mxu0 0
    %209 = vmatpush1.bf16.msra.mxu0 %v191
    %210 = vmatprep.subr.bf16.mxu0 0
    %211 = vmatpush1.bf16.msra.mxu0 %v192
    %212 = vmatprep.subr.bf16.mxu0 0
    %213 = vmatpush1.bf16.msra.mxu0 %v193
    %214 = vmatprep.subr.bf16.mxu0 0
    %215 = vmatpush1.bf16.msra.mxu0 %v194
    %216 = vmatprep.subr.bf16.mxu0 0
    %217 = vmatpush1.bf16.msra.mxu0 %v195
    %218 = vmatprep.subr.bf16.mxu0 0
    %219 = vmatpush1.bf16.msra.mxu0 %v196
    %220 = vmatprep.subr.bf16.mxu0 0
    %221 = vmatpush1.bf16.msra.mxu0 %v197
    %222 = vmatprep.subr.bf16.mxu0 0
    %223 = vmatpush1.bf16.msra.mxu0 0
    %224 = vmatprep.subr.bf16.mxu0 0
    %225 = vmatpush1.bf16.msra.mxu0 0
    %226 = vmatprep.subr.bf16.mxu0 0
    %227 = vmatpush1.bf16.msra.mxu0 0
    %228 = vmatprep.subr.bf16.mxu0 0
    %229 = vmatpush1.bf16.msra.mxu0 0
    %230 = vmatprep.subr.bf16.mxu0 0
    %231 = vmatpush1.bf16.msra.mxu0 0
    %232 = vmatprep.subr.bf16.mxu0 0
    %233 = vmatpush1.bf16.msra.mxu0 0
    %234 = vmatprep.subr.bf16.mxu0 0
    %235 = vmatpush1.bf16.msra.mxu0 0
    %236 = vmatprep.subr.bf16.mxu0 0
    %237 = vmatpush1.bf16.msra.mxu0 0
    %238 = vmatprep.mubr.bf16.mxu0 0
    %239 = vmatmul.mubr.bf16.gmra.mrb[0].mxu0 %v134
    %v240 = vpop.f32.mrb[0].mxu0
    %v241 = vadd.f32 %v156, %v240
    %v242 = vpop.f32.mrb[0].mxu0
    %v243 = vpop.f32.mrb[0].mxu0
    %v244 = vpop.f32.mrb[0].mxu0
    %245 = vdwg.mxu0
    %v246 = vxor.u32 %v241, 2147483648
    %v247 = vmul.f32 %v246, 1.442695
    %v248 = vpow.pop %v247
    %v249 = vadd.f32 %v248, 1.0
    %v250 = vrcp.pop %v249
    %v251 = vmul.f32 1.0, %v250
    %v252 = vmul.f32 %v241, %v251
    %v253 = vpack.c.bf16 %v252, %v252
    %v254 = vld [vmem:[#allocation8] sm:$0xff]
    %v255 = vld [vmem:[#allocation8 + $0x8] sm:$0xf]
    %v256 = vld [vmem:[#allocation8 + $0xc] sm:$0xff]
    %v257 = vld [vmem:[#allocation8 + $0x14] sm:$0xf]
    %v258 = vld [vmem:[#allocation8 + $0x18] sm:$0xff]
    %v259 = vld [vmem:[#allocation8 + $0x20] sm:$0xf]
    %v260 = vld [vmem:[#allocation8 + $0x24] sm:$0xff]
    %v261 = vld [vmem:[#allocation8 + $0x2c] sm:$0xf]
    %v262 = vld [vmem:[#allocation8 + $0x30] sm:$0xff]
    %v263 = vld [vmem:[#allocation8 + $0x38] sm:$0xf]
    %v264 = vld [vmem:[#allocation8 + $0x3c] sm:$0xff]
    %v265 = vld [vmem:[#allocation8 + $0x44] sm:$0xf]
    %v266 = vld [vmem:[#allocation8 + $0x48] sm:$0xff]
    %v267 = vld [vmem:[#allocation8 + $0x50] sm:$0xf]
    %v268 = vld [vmem:[#allocation8 + $0x54] sm:$0xff]
    %v269 = vld [vmem:[#allocation8 + $0x5c] sm:$0xf]
    %v270 = vld [vmem:[#allocation8 + $0x60] sm:$0xff]
    %v271 = vld [vmem:[#allocation8 + $0x68] sm:$0xf]
    %v272 = vld [vmem:[#allocation8 + $0x6c] sm:$0xff]
    %v273 = vld [vmem:[#allocation8 + $0x74] sm:$0xf]
    %v274 = vld [vmem:[#allocation8 + $0x78] sm:$0xff]
    %v275 = vld [vmem:[#allocation8 + $0x80] sm:$0xf]
    %v276 = vld [vmem:[#allocation8 + $0x84] sm:$0xff]
    %v277 = vld [vmem:[#allocation8 + $0x8c] sm:$0xf]
    %v278 = vld [vmem:[#allocation8 + $0x90] sm:$0xff]
    %v279 = vld [vmem:[#allocation8 + $0x98] sm:$0xf]
    %v280 = vld [vmem:[#allocation8 + $0x9c] sm:$0xff]
    %v281 = vld [vmem:[#allocation8 + $0xa4] sm:$0xf]
    %v282 = vld [vmem:[#allocation8 + $0xa8] sm:$0xff]
    %v283 = vld [vmem:[#allocation8 + $0xb0] sm:$0xf]
    %v284 = vld [vmem:[#allocation8 + $0xb4] sm:$0xff]
    %v285 = vld [vmem:[#allocation8 + $0xbc] sm:$0xf]
    %v286 = vld [vmem:[%s5] sm:$0x7]
    %v288 = vlaneseq
    %v289 = vshrl.u32 %v288, 7
    %v290 = vsub.s32 0, %v289
    %v291 = vrot.slane %v286, %v290
    %v292 = vlaneseq
    %v293 = vshrl.u32 %v292, 7
    %v294 = vsub.s32 1, %v293
    %v295 = vrot.slane %v286, %v294
    %v296 = vlaneseq
    %v297 = vshrl.u32 %v296, 7
    %v298 = vsub.s32 2, %v297
    %v299 = vrot.slane %v286, %v298
    %v335 = vunpack.c.l.b16 %v254
    %v336 = vunpack.c.h.b16 %v254
    %v337 = vunpack.c.l.b16 %v255
    %v338 = vunpack.c.l.b16 %v256
    %v339 = vunpack.c.h.b16 %v256
    %v340 = vunpack.c.l.b16 %v257
    %v341 = vunpack.c.l.b16 %v258
    %v342 = vunpack.c.h.b16 %v258
    %v343 = vunpack.c.l.b16 %v259
    %v344 = vunpack.c.l.b16 %v260
    %v345 = vunpack.c.h.b16 %v260
    %v346 = vunpack.c.l.b16 %v261
    %v347 = vunpack.c.l.b16 %v262
    %v348 = vunpack.c.h.b16 %v262
    %v349 = vunpack.c.l.b16 %v263
    %v350 = vunpack.c.l.b16 %v264
    %v351 = vunpack.c.h.b16 %v264
    %v352 = vunpack.c.l.b16 %v265
    %v353 = vunpack.c.l.b16 %v266
    %v354 = vunpack.c.h.b16 %v266
    %v355 = vunpack.c.l.b16 %v267
    %v356 = vunpack.c.l.b16 %v268
    %v357 = vunpack.c.h.b16 %v268
    %v358 = vunpack.c.l.b16 %v269
    %v359 = vunpack.c.l.b16 %v270
    %v360 = vunpack.c.h.b16 %v270
    %v361 = vunpack.c.l.b16 %v271
    %v362 = vunpack.c.l.b16 %v272
    %v363 = vunpack.c.h.b16 %v272
    %v364 = vunpack.c.l.b16 %v273
    %v365 = vunpack.c.l.b16 %v274
    %v366 = vunpack.c.h.b16 %v274
    %v367 = vunpack.c.l.b16 %v275
    %v368 = vunpack.c.l.b16 %v276
    %v369 = vunpack.c.h.b16 %v276
    %v370 = vunpack.c.l.b16 %v277
    %v371 = vunpack.c.l.b16 %v278
    %v372 = vunpack.c.h.b16 %v278
    %v373 = vunpack.c.l.b16 %v279
    %v374 = vunpack.c.l.b16 %v280
    %v375 = vunpack.c.h.b16 %v280
    %v376 = vunpack.c.l.b16 %v281
    %v377 = vunpack.c.l.b16 %v282
    %v378 = vunpack.c.h.b16 %v282
    %v379 = vunpack.c.l.b16 %v283
    %v380 = vunpack.c.l.b16 %v284
    %v381 = vunpack.c.h.b16 %v284
    %v382 = vunpack.c.l.b16 %v285
    %v383 = vpack.c.b16 %v338, %v335
    %v384 = vpack.c.b16 %v339, %v336
    %v385 = vpack.c.b16 %v340, %v337
    %v386 = vpack.c.b16 %v344, %v341
    %v387 = vpack.c.b16 %v345, %v342
    %v388 = vpack.c.b16 %v346, %v343
    %v389 = vpack.c.b16 %v350, %v347
    %v390 = vpack.c.b16 %v351, %v348
    %v391 = vpack.c.b16 %v352, %v349
    %v392 = vpack.c.b16 %v356, %v353
    %v393 = vpack.c.b16 %v357, %v354
    %v394 = vpack.c.b16 %v358, %v355
    %v395 = vpack.c.b16 %v362, %v359
    %v396 = vpack.c.b16 %v363, %v360
    %v397 = vpack.c.b16 %v364, %v361
    %v398 = vpack.c.b16 %v368, %v365
    %v399 = vpack.c.b16 %v369, %v366
    %v400 = vpack.c.b16 %v370, %v367
    %v401 = vpack.c.b16 %v374, %v371
    %v402 = vpack.c.b16 %v375, %v372
    %v403 = vpack.c.b16 %v376, %v373
    %v404 = vpack.c.b16 %v380, %v377
    %v405 = vpack.c.b16 %v381, %v378
    %v406 = vpack.c.b16 %v382, %v379
    %431 = vmatprep.subr.bf16.mxu0 %v384
    %432 = vmatpush1.bf16.msra.mxu0 %v383
    %433 = vmatprep.subr.bf16.mxu0 %v387
    %434 = vmatpush1.bf16.msra.mxu0 %v386
    %435 = vmatprep.subr.bf16.mxu0 %v390
    %436 = vmatpush1.bf16.msra.mxu0 %v389
    %437 = vmatprep.subr.bf16.mxu0 %v393
    %438 = vmatpush1.bf16.msra.mxu0 %v392
    %439 = vmatprep.subr.bf16.mxu0 %v396
    %440 = vmatpush1.bf16.msra.mxu0 %v395
    %441 = vmatprep.subr.bf16.mxu0 %v399
    %442 = vmatpush1.bf16.msra.mxu0 %v398
    %443 = vmatprep.subr.bf16.mxu0 %v402
    %444 = vmatpush1.bf16.msra.mxu0 %v401
    %445 = vmatprep.subr.bf16.mxu0 %v405
    %446 = vmatpush1.bf16.msra.mxu0 %v404
    %447 = vmatprep.subr.bf16.mxu0 0
    %448 = vmatpush1.bf16.msra.mxu0 0
    %449 = vmatprep.subr.bf16.mxu0 0
    %450 = vmatpush1.bf16.msra.mxu0 0
    %451 = vmatprep.subr.bf16.mxu0 0
    %452 = vmatpush1.bf16.msra.mxu0 0
    %453 = vmatprep.subr.bf16.mxu0 0
    %454 = vmatpush1.bf16.msra.mxu0 0
    %455 = vmatprep.subr.bf16.mxu0 0
    %456 = vmatpush1.bf16.msra.mxu0 0
    %457 = vmatprep.subr.bf16.mxu0 0
    %458 = vmatpush1.bf16.msra.mxu0 0
    %459 = vmatprep.subr.bf16.mxu0 0
    %460 = vmatpush1.bf16.msra.mxu0 0
    %461 = vmatprep.subr.bf16.mxu0 0
    %462 = vmatpush1.bf16.msra.mxu0 0
    %463 = vmatprep.mubr.bf16.mxu0 0
    %464 = vmatmul.mubr.bf16.gmra.mrb[0].mxu0 %v253
    %v465 = vpop.f32.mrb[0].mxu0
    %v466 = vadd.f32 %v291, %v465
    %v467 = vpop.f32.mrb[0].mxu0
    %v468 = vadd.f32 %v295, %v467
    %v469 = vpop.f32.mrb[0].mxu0
    %v470 = vpop.f32.mrb[0].mxu0
    %471 = vdwg.mxu0
    %472 = vmatprep.subr.bf16.mxu0 0
    %473 = vmatpush1.bf16.msra.mxu0 %v385
    %474 = vmatprep.subr.bf16.mxu0 0
    %475 = vmatpush1.bf16.msra.mxu0 %v388
    %476 = vmatprep.subr.bf16.mxu0 0
    %477 = vmatpush1.bf16.msra.mxu0 %v391
    %478 = vmatprep.subr.bf16.mxu0 0
    %479 = vmatpush1.bf16.msra.mxu0 %v394
    %480 = vmatprep.subr.bf16.mxu0 0
    %481 = vmatpush1.bf16.msra.mxu0 %v397
    %482 = vmatprep.subr.bf16.mxu0 0
    %483 = vmatpush1.bf16.msra.mxu0 %v400
    %484 = vmatprep.subr.bf16.mxu0 0
    %485 = vmatpush1.bf16.msra.mxu0 %v403
    %486 = vmatprep.subr.bf16.mxu0 0
    %487 = vmatpush1.bf16.msra.mxu0 %v406
    %488 = vmatprep.subr.bf16.mxu0 0
    %489 = vmatpush1.bf16.msra.mxu0 0
    %490 = vmatprep.subr.bf16.mxu0 0
    %491 = vmatpush1.bf16.msra.mxu0 0
    %492 = vmatprep.subr.bf16.mxu0 0
    %493 = vmatpush1.bf16.msra.mxu0 0
    %494 = vmatprep.subr.bf16.mxu0 0
    %495 = vmatpush1.bf16.msra.mxu0 0
    %496 = vmatprep.subr.bf16.mxu0 0
    %497 = vmatpush1.bf16.msra.mxu0 0
    %498 = vmatprep.subr.bf16.mxu0 0
    %499 = vmatpush1.bf16.msra.mxu0 0
    %500 = vmatprep.subr.bf16.mxu0 0
    %501 = vmatpush1.bf16.msra.mxu0 0
    %502 = vmatprep.subr.bf16.mxu0 0
    %503 = vmatpush1.bf16.msra.mxu0 0
    %504 = vmatprep.mubr.bf16.mxu0 0
    %505 = vmatmul.mubr.bf16.gmra.mrb[0].mxu0 %v253
    %v506 = vpop.f32.mrb[0].mxu0
    %v507 = vadd.f32 %v299, %v506
    %v508 = vpop.f32.mrb[0].mxu0
    %v509 = vpop.f32.mrb[0].mxu0
    %v510 = vpop.f32.mrb[0].mxu0
    %511 = vdwg.mxu0
    %v512 = vmul.f32 %v466, %v132
    %v513 = vadd.f32 %v512, %v468
    %v514 = vpack.c.bf16 %v513, %v513
    %v515 = vld [vmem:[#allocation10] sm:$0xf]
    %v516 = vld [vmem:[#allocation10 + $0x4] sm:$0xf]
    %v517 = vld [vmem:[#allocation10 + $0x8] sm:$0xf]
    %v518 = vld [vmem:[#allocation10 + $0xc] sm:$0xf]
    %v519 = vld [vmem:[#allocation10 + $0x10] sm:$0xf]
    %v520 = vld [vmem:[#allocation10 + $0x14] sm:$0xf]
    %v521 = vld [vmem:[#allocation10 + $0x18] sm:$0xf]
    %v522 = vld [vmem:[#allocation10 + $0x1c] sm:$0xf]
    %v523 = vld [vmem:[#allocation10 + $0x20] sm:$0xf]
    %v524 = vld [vmem:[#allocation10 + $0x24] sm:$0xf]
    %v525 = vld [vmem:[#allocation10 + $0x28] sm:$0xf]
    %v526 = vld [vmem:[#allocation10 + $0x2c] sm:$0xf]
    %v527 = vld [vmem:[#allocation10 + $0x30] sm:$0xf]
    %v528 = vld [vmem:[#allocation10 + $0x34] sm:$0xf]
    %v529 = vld [vmem:[#allocation10 + $0x38] sm:$0xf]
    %v530 = vld [vmem:[#allocation10 + $0x3c] sm:$0xf]
    %v531 = vld [vmem:[%s7] sm:$0x1]
    %v533 = vlaneseq
    %v534 = vshrl.u32 %v533, 7
    %v535 = vsub.s32 0, %v534
    %v536 = vrot.slane %v531, %v535
    %v554 = vunpack.c.l.b16 %v515
    %v555 = vunpack.c.l.b16 %v516
    %v556 = vunpack.c.l.b16 %v517
    %v557 = vunpack.c.l.b16 %v518
    %v558 = vunpack.c.l.b16 %v519
    %v559 = vunpack.c.l.b16 %v520
    %v560 = vunpack.c.l.b16 %v521
    %v561 = vunpack.c.l.b16 %v522
    %v562 = vunpack.c.l.b16 %v523
    %v563 = vunpack.c.l.b16 %v524
    %v564 = vunpack.c.l.b16 %v525
    %v565 = vunpack.c.l.b16 %v526
    %v566 = vunpack.c.l.b16 %v527
    %v567 = vunpack.c.l.b16 %v528
    %v568 = vunpack.c.l.b16 %v529
    %v569 = vunpack.c.l.b16 %v530
    %v570 = vpack.c.b16 %v555, %v554
    %v571 = vpack.c.b16 %v557, %v556
    %v572 = vpack.c.b16 %v559, %v558
    %v573 = vpack.c.b16 %v561, %v560
    %v574 = vpack.c.b16 %v563, %v562
    %v575 = vpack.c.b16 %v565, %v564
    %v576 = vpack.c.b16 %v567, %v566
    %v577 = vpack.c.b16 %v569, %v568
    %586 = vmatprep.subr.bf16.mxu0 0
    %587 = vmatpush1.bf16.msra.mxu0 %v570
    %588 = vmatprep.subr.bf16.mxu0 0
    %589 = vmatpush1.bf16.msra.mxu0 %v571
    %590 = vmatprep.subr.bf16.mxu0 0
    %591 = vmatpush1.bf16.msra.mxu0 %v572
    %592 = vmatprep.subr.bf16.mxu0 0
    %593 = vmatpush1.bf16.msra.mxu0 %v573
    %594 = vmatprep.subr.bf16.mxu0 0
    %595 = vmatpush1.bf16.msra.mxu0 %v574
    %596 = vmatprep.subr.bf16.mxu0 0
    %597 = vmatpush1.bf16.msra.mxu0 %v575
    %598 = vmatprep.subr.bf16.mxu0 0
    %599 = vmatpush1.bf16.msra.mxu0 %v576
    %600 = vmatprep.subr.bf16.mxu0 0
    %601 = vmatpush1.bf16.msra.mxu0 %v577
    %602 = vmatprep.subr.bf16.mxu0 0
    %603 = vmatpush1.bf16.msra.mxu0 0
    %604 = vmatprep.subr.bf16.mxu0 0
    %605 = vmatpush1.bf16.msra.mxu0 0
    %606 = vmatprep.subr.bf16.mxu0 0
    %607 = vmatpush1.bf16.msra.mxu0 0
    %608 = vmatprep.subr.bf16.mxu0 0
    %609 = vmatpush1.bf16.msra.mxu0 0
    %610 = vmatprep.subr.bf16.mxu0 0
    %611 = vmatpush1.bf16.msra.mxu0 0
    %612 = vmatprep.subr.bf16.mxu0 0
    %613 = vmatpush1.bf16.msra.mxu0 0
    %614 = vmatprep.subr.bf16.mxu0 0
    %615 = vmatpush1.bf16.msra.mxu0 0
    %616 = vmatprep.subr.bf16.mxu0 0
    %617 = vmatpush1.bf16.msra.mxu0 0
    %618 = vmatprep.mubr.bf16.mxu0 0
    %619 = vmatmul.mubr.bf16.gmra.mrb[0].mxu0 %v514
    %v620 = vpop.f32.mrb[0].mxu0
    %v621 = vadd.f32 %v536, %v620
    %v622 = vpop.f32.mrb[0].mxu0
    %v623 = vpop.f32.mrb[0].mxu0
    %v624 = vpop.f32.mrb[0].mxu0
    %625 = vdwg.mxu0
    %v626 = vxor.u32 %v621, 2147483648
    %v627 = vmul.f32 %v626, 1.442695
    %v628 = vpow.pop %v627
    %v629 = vadd.f32 %v628, 1.0
    %v630 = vrcp.pop %v629
    %v631 = vmul.f32 1.0, %v630
    %v632 = vmul.f32 %v621, %v631
    %v633 = vpack.c.bf16 %v632, %v632
    %v634 = vld [vmem:[#allocation11] sm:$0xf]
    %v635 = vld [vmem:[#allocation11 + $0x4] sm:$0xf]
    %v636 = vld [vmem:[#allocation11 + $0x8] sm:$0xf]
    %v637 = vld [vmem:[#allocation11 + $0xc] sm:$0xf]
    %v638 = vld [vmem:[#allocation11 + $0x10] sm:$0xf]
    %v639 = vld [vmem:[#allocation11 + $0x14] sm:$0xf]
    %v640 = vld [vmem:[#allocation11 + $0x18] sm:$0xf]
    %v641 = vld [vmem:[#allocation11 + $0x1c] sm:$0xf]
    %v642 = vld [vmem:[#allocation11 + $0x20] sm:$0xf]
    %v643 = vld [vmem:[#allocation11 + $0x24] sm:$0xf]
    %v644 = vld [vmem:[#allocation11 + $0x28] sm:$0xf]
    %v645 = vld [vmem:[#allocation11 + $0x2c] sm:$0xf]
    %v646 = vld [vmem:[#allocation11 + $0x30] sm:$0xf]
    %v647 = vld [vmem:[#allocation11 + $0x34] sm:$0xf]
    %v648 = vld [vmem:[#allocation11 + $0x38] sm:$0xf]
    %v649 = vld [vmem:[#allocation11 + $0x3c] sm:$0xf]
    %v650 = vld [vmem:[%s9] sm:$0x1]
    %v652 = vlaneseq
    %v653 = vshrl.u32 %v652, 7
    %v654 = vsub.s32 0, %v653
    %v655 = vrot.slane %v650, %v654
    %v673 = vunpack.c.l.b16 %v634
    %v674 = vunpack.c.l.b16 %v635
    %v675 = vunpack.c.l.b16 %v636
    %v676 = vunpack.c.l.b16 %v637
    %v677 = vunpack.c.l.b16 %v638
    %v678 = vunpack.c.l.b16 %v639
    %v679 = vunpack.c.l.b16 %v640
    %v680 = vunpack.c.l.b16 %v641
    %v681 = vunpack.c.l.b16 %v642
    %v682 = vunpack.c.l.b16 %v643
    %v683 = vunpack.c.l.b16 %v644
    %v684 = vunpack.c.l.b16 %v645
    %v685 = vunpack.c.l.b16 %v646
    %v686 = vunpack.c.l.b16 %v647
    %v687 = vunpack.c.l.b16 %v648
    %v688 = vunpack.c.l.b16 %v649
    %v689 = vpack.c.b16 %v674, %v673
    %v690 = vpack.c.b16 %v676, %v675
    %v691 = vpack.c.b16 %v678, %v677
    %v692 = vpack.c.b16 %v680, %v679
    %v693 = vpack.c.b16 %v682, %v681
    %v694 = vpack.c.b16 %v684, %v683
    %v695 = vpack.c.b16 %v686, %v685
    %v696 = vpack.c.b16 %v688, %v687
    %705 = vmatprep.subr.bf16.mxu0 0
    %706 = vmatpush1.bf16.msra.mxu0 %v689
    %707 = vmatprep.subr.bf16.mxu0 0
    %708 = vmatpush1.bf16.msra.mxu0 %v690
    %709 = vmatprep.subr.bf16.mxu0 0
    %710 = vmatpush1.bf16.msra.mxu0 %v691
    %711 = vmatprep.subr.bf16.mxu0 0
    %712 = vmatpush1.bf16.msra.mxu0 %v692
    %713 = vmatprep.subr.bf16.mxu0 0
    %714 = vmatpush1.bf16.msra.mxu0 %v693
    %715 = vmatprep.subr.bf16.mxu0 0
    %716 = vmatpush1.bf16.msra.mxu0 %v694
    %717 = vmatprep.subr.bf16.mxu0 0
    %718 = vmatpush1.bf16.msra.mxu0 %v695
    %719 = vmatprep.subr.bf16.mxu0 0
    %720 = vmatpush1.bf16.msra.mxu0 %v696
    %721 = vmatprep.subr.bf16.mxu0 0
    %722 = vmatpush1.bf16.msra.mxu0 0
    %723 = vmatprep.subr.bf16.mxu0 0
    %724 = vmatpush1.bf16.msra.mxu0 0
    %725 = vmatprep.subr.bf16.mxu0 0
    %726 = vmatpush1.bf16.msra.mxu0 0
    %727 = vmatprep.subr.bf16.mxu0 0
    %728 = vmatpush1.bf16.msra.mxu0 0
    %729 = vmatprep.subr.bf16.mxu0 0
    %730 = vmatpush1.bf16.msra.mxu0 0
    %731 = vmatprep.subr.bf16.mxu0 0
    %732 = vmatpush1.bf16.msra.mxu0 0
    %733 = vmatprep.subr.bf16.mxu0 0
    %734 = vmatpush1.bf16.msra.mxu0 0
    %735 = vmatprep.subr.bf16.mxu0 0
    %736 = vmatpush1.bf16.msra.mxu0 0
    %737 = vmatprep.mubr.bf16.mxu0 0
    %738 = vmatmul.mubr.bf16.gmra.mrb[0].mxu0 %v633
    %v739 = vpop.f32.mrb[0].mxu0
    %v740 = vadd.f32 %v655, %v739
    %v741 = vpop.f32.mrb[0].mxu0
    %v742 = vpop.f32.mrb[0].mxu0
    %v743 = vpop.f32.mrb[0].mxu0
    %744 = vdwg.mxu0
    %v745 = vmul.f32 %v740, %v507
    %v746 = vadd.f32 %v745, %v115
    %747 = vst [vmem:[#allocation13] sm:$0xff] %v746
    // Predicated region
    $region66: #{tpu_custom_call.1} parent=1 // pred_check
      _
    $region67: #{tpu_custom_call.1} parent=1 // pred_check_branch
      %749 = sbr.rel (0) target = $region69
    $region68: #{tpu_custom_call.1} parent=1 // pred_region
      %s751 = ssub.s32 128, 128
      %752 = vsyncadd [#allocation4], %s751
      %s754 = sshll.u32 [#allocation13], 4
      %s755 = int_to_ptr.vmem [resolvable:$true] %s754
      %757 = dma.vmem_to_hbm [thread:$0]  %s755, 128, %s10, [#allocation4]
    $region69: #{tpu_custom_call.1} parent=1 // pred_fallthru
      _
    // Predicated region
    $region70: #{tpu_custom_call.1} parent=1 // pred_check
      _
    $region71: #{tpu_custom_call.1} parent=1 // pred_check_branch
      %759 = sbr.rel (0) target = $region73
    $region72: #{tpu_custom_call.1} parent=1 // pred_region
      %760 = dma.done [#allocation4], 128
    $region73: #{tpu_custom_call.1} parent=1 // pred_fallthru
      _
    %761 = vsyncpa [#allocation3], 1
    %762 = vsyncpa [#allocation6], 1
    %763 = vsyncpa [#allocation9], 1
    %764 = vsyncpa [#allocation12], 1
    %765 = vsyncpa [#allocation4], 1

</llo_original>
